<compile_context>
chip_gen: v6e
topology: v6e:2x2x1
jax: 0.10.0
libtpu: 0.0.40
codegen_flags: <defaults>
</compile_context>

<pallas_src>
import jax
import jax.numpy as jnp
from jax.experimental import pallas as pl
from jax.experimental.pallas import tpu as pltpu


_MAX_FULL_ROW_N = 4096          # take whole rows (full-dim block) up to this width
_TILE_N = 512                   # otherwise fixed lane tile (multiple of 128)
_MAX_TILE_ELEMS = 1024 * 512    # f32 elems per tile: ~2 MiB/array/buffer


def _lif_kernel(params_ref, i_ref, v_ref, spk_ref, vout_ref):
    """Elementwise LIF update on one (tile_b, tile_n) block."""
    threshold = params_ref[0]
    decay = params_ref[1]
    reset = params_ref[2]

    v_new = v_ref[...] * decay + i_ref[...]
    mask = v_new > threshold                      # single compare, reused below
    spk_ref[...] = mask.astype(spk_ref.dtype)
    vout_ref[...] = jnp.where(mask, reset, v_new)


def _lif_kernel_zero_state(params_ref, i_ref, spk_ref, vout_ref):
    """v_prev == 0 fast path: skips the membrane-potential input stream."""
    threshold = params_ref[0]
    reset = params_ref[2]

    v_new = i_ref[...]                            # v_prev * decay == 0
    mask = v_new > threshold
    spk_ref[...] = mask.astype(spk_ref.dtype)
    vout_ref[...] = jnp.where(mask, reset, v_new)


def _choose_tiles(batch, num_neurons):
    """Pick (tile_b, tile_n, grid_b, grid_n) for a (batch, num_neurons) array."""
    # Lane (last) dim: whole row when modest (full-dim block is always legal),
    # else a fixed 512-lane tile (multiple of 128 -> unmasked vst; Pallas
    # clips the ragged edge block).
    if num_neurons <= _MAX_FULL_ROW_N:
        tile_n = num_neurons
    else:
        tile_n = _TILE_N
    grid_n = pl.cdiv(num_neurons, tile_n)

    # Row (second-last) dim: as many rows as fit the per-tile element budget,
    # on the 8-sublane granularity.
    max_rows = max(8, (_MAX_TILE_ELEMS // tile_n) // 8 * 8)
    if batch <= 8:
        tile_b = batch                      # full dim, single block
    elif batch <= max_rows:
        tile_b = batch                      # full dim -> no divisibility req.
        if grid_n == 1 and batch >= 16:
            # v7x: make sure the "parallel" axis has >= 2 blocks so both
            # TensorCores get work.  Round half the rows up to 8 sublanes.
            tile_b = ((pl.cdiv(batch, 2) + 7) // 8) * 8
    else:
        tile_b = max_rows                   # multiple of 8, ragged edge clipped
    grid_b = pl.cdiv(batch, tile_b)
    return tile_b, tile_n, grid_b, grid_n


def lif_cell_forward(current_input, v_prev=None, *,
                     threshold=1.0, decay_constant=0.9, reset_potential=0.0):
    """
    Pallas TPU implementation of LIFCell.forward.

    Args:
      current_input: (batch, num_neurons) float32 input current.
      v_prev: optional (batch, num_neurons) float32 membrane potential.
              If None, treated as zeros (dedicated kernel, no zeros array).

    Returns:
      (spikes, v_new_reset), both (batch, num_neurons) float32.
    """
    current_input = jnp.asarray(current_input, jnp.float32)
    batch, num_neurons = current_input.shape

    tile_b, tile_n, grid_b, grid_n = _choose_tiles(batch, num_neurons)
    block = pl.BlockSpec((tile_b, tile_n), lambda i, j: (i, j))
    smem_spec = pl.BlockSpec(memory_space=pltpu.MemorySpace.SMEM)

    params = jnp.array([threshold, decay_constant, reset_potential],
                       dtype=jnp.float32)

    out_shape = (
        jax.ShapeDtypeStruct((batch, num_neurons), jnp.float32),  # spikes
        jax.ShapeDtypeStruct((batch, num_neurons), jnp.float32),  # v_new_reset
    )

    if v_prev is None:
        kernel = _lif_kernel_zero_state
        operands = (params, current_input)
        in_specs = [smem_spec, block]
        io_aliases = {}
    else:
        v_prev = jnp.asarray(v_prev, jnp.float32)
        kernel = _lif_kernel
        operands = (params, current_input, v_prev)
        in_specs = [smem_spec, block, block]
        # v_prev (input 2) aliases v_new_reset (output 1): in-place state
        # update directly on the caller's (B, N) buffer.
        io_aliases = {2: 1}

    spikes, v_out = pl.pallas_call(
        kernel,
        out_shape=out_shape,
        grid=(grid_b, grid_n),
        in_specs=in_specs,
        out_specs=(block, block),
        input_output_aliases=io_aliases,
        compiler_params=pltpu.CompilerParams(
            dimension_semantics=("parallel", "parallel"),
            vmem_limit_bytes=48 * 1024 * 1024,
        ),
    )(*operands)
    return spikes, v_out


def _reference(current_input, v_prev, threshold, decay, reset):
    v_new = v_prev * decay + current_input
    spikes = (v_new > threshold).astype(jnp.float32)
    v_reset = jnp.where(spikes == 1.0, reset, v_new)
    return spikes, v_reset


if __name__ == "__main__":
    key = jax.random.PRNGKey(0)
    k1, k2, k3, k4, k5, k6 = jax.random.split(key, 6)
    threshold, decay, reset = 1.0, 0.9, 0.0

    # --- small shape matching the module interface (batch=2, hidden=32) ---
    batch, hidden = 2, 32
    current_input = jax.random.normal(k1, (batch, hidden), dtype=jnp.float32) * 1.5
    v_prev = jax.random.normal(k2, (batch, hidden), dtype=jnp.float32) * 0.5

    ref_spikes, ref_v = _reference(current_input, v_prev, threshold, decay, reset)
    spikes, v_new_reset = lif_cell_forward(
        current_input, v_prev,
        threshold=threshold, decay_constant=decay, reset_potential=reset)
    jax.block_until_ready((spikes, v_new_reset))
    assert jnp.array_equal(spikes, ref_spikes), "spike mismatch"
    assert jnp.allclose(v_new_reset, ref_v, atol=1e-6), "membrane potential mismatch"

    # --- v_prev=None (zero-init) path: dedicated kernel, no zeros array ---
    ref_spikes0, ref_v0 = _reference(current_input, jnp.zeros_like(current_input),
                                     threshold, decay, reset)
    spikes0, v0 = lif_cell_forward(
        current_input, None,
        threshold=threshold, decay_constant=decay, reset_potential=reset)
    jax.block_until_ready((spikes0, v0))
    assert jnp.array_equal(spikes0, ref_spikes0), "spike mismatch (zero-init path)"
    assert jnp.allclose(v0, ref_v0, atol=1e-6), "potential mismatch (zero-init path)"

    # --- larger shape: full-row blocks (N=2000), B=160 split into 2 row blocks
    #     (exercises the v7x two-TensorCore split), no padding round-trips ---
    batch2, hidden2 = 160, 2000
    cur2 = jax.random.normal(k3, (batch2, hidden2), dtype=jnp.float32)
    vp2 = jax.random.normal(k4, (batch2, hidden2), dtype=jnp.float32)
    ref_spk2, ref_v2 = _reference(cur2, vp2, threshold, decay, reset)
    spk2, v2 = lif_cell_forward(
        cur2, vp2,
        threshold=threshold, decay_constant=decay, reset_potential=reset)
    jax.block_until_ready((spk2, v2))
    assert jnp.array_equal(spk2, ref_spk2), "spike mismatch (row-tiled path)"
    assert jnp.allclose(v2, ref_v2, atol=1e-6), "potential mismatch (row-tiled path)"

    # --- wide shape: N=5000 -> 512-lane tiles with a clipped ragged edge ---
    batch3, hidden3 = 24, 5000
    cur3 = jax.random.normal(k5, (batch3, hidden3), dtype=jnp.float32)
    vp3 = jax.random.normal(k6, (batch3, hidden3), dtype=jnp.float32)
    ref_spk3, ref_v3 = _reference(cur3, vp3, threshold, decay, reset)
    spk3, v3 = lif_cell_forward(
        cur3, vp3,
        threshold=threshold, decay_constant=decay, reset_potential=reset)
    jax.block_until_ready((spk3, v3))
    assert jnp.array_equal(spk3, ref_spk3), "spike mismatch (lane-tiled path)"
    assert jnp.allclose(v3, ref_v3, atol=1e-6), "potential mismatch (lane-tiled path)"

    print("KERNEL_OK")
</pallas_src>

<mosaic_0001>
module attributes {stable_mosaic.version = 11 : i64} {
  func.func @_lif_kernel(%arg0: i32, %arg1: i32, %arg2: memref<3xf32, #tpu.memory_space<smem>>, %arg3: memref<2x32xf32, #tpu.memory_space<vmem>>, %arg4: memref<2x32xf32, #tpu.memory_space<vmem>>, %arg5: memref<2x32xf32, #tpu.memory_space<vmem>>, %arg6: memref<2x32xf32, #tpu.memory_space<vmem>>) attributes {dimension_semantics = [#tpu.dimension_semantics<parallel>, #tpu.dimension_semantics<parallel>], iteration_bounds = array<i64: 1, 1>, scalar_prefetch = 0 : i64, scratch_operands = 0 : i64, tpu.core_type = #tpu.core_type<tc>, window_params = [{transform_indices = @transform_0, window_bounds = array<i64: 3>}, {transform_indices = @transform_1, window_bounds = array<i64: 2, 32>}, {transform_indices = @transform_2, window_bounds = array<i64: 2, 32>}, {transform_indices = @transform_3, window_bounds = array<i64: 2, 32>}, {transform_indices = @transform_4, window_bounds = array<i64: 2, 32>}]} {
    %c0 = arith.constant 0 : index
    %0 = memref.load %arg2[%c0] : memref<3xf32, #tpu.memory_space<smem>>
    %c1 = arith.constant 1 : index
    %1 = memref.load %arg2[%c1] : memref<3xf32, #tpu.memory_space<smem>>
    %c2 = arith.constant 2 : index
    %2 = memref.load %arg2[%c2] : memref<3xf32, #tpu.memory_space<smem>>
    %c0_0 = arith.constant 0 : index
    %c0_1 = arith.constant 0 : index
    %3 = vector.load %arg4[%c0_0, %c0_1] : memref<2x32xf32, #tpu.memory_space<vmem>>, vector<2x32xf32>
    %4 = vector.broadcast %1 : f32 to vector<2x32xf32>
    %5 = arith.mulf %3, %4 : vector<2x32xf32>
    %c0_2 = arith.constant 0 : index
    %c0_3 = arith.constant 0 : index
    %6 = vector.load %arg3[%c0_2, %c0_3] : memref<2x32xf32, #tpu.memory_space<vmem>>, vector<2x32xf32>
    %7 = arith.addf %5, %6 : vector<2x32xf32>
    %8 = vector.broadcast %0 : f32 to vector<2x32xf32>
    %9 = arith.cmpf ogt, %7, %8 : vector<2x32xf32>
    %10 = arith.extui %9 : vector<2x32xi1> to vector<2x32xi32>
    %11 = arith.sitofp %10 : vector<2x32xi32> to vector<2x32xf32>
    %c0_4 = arith.constant 0 : index
    %c0_5 = arith.constant 0 : index
    %12 = vector.load %arg5[%c0_4, %c0_5] : memref<2x32xf32, #tpu.memory_space<vmem>>, vector<2x32xf32>
    tpu.vector_store %arg5[%c0_4, %c0_5], %11 {strides = array<i32>} : memref<2x32xf32, #tpu.memory_space<vmem>>, vector<2x32xf32>,
    %13 = vector.broadcast %2 : f32 to vector<2x32xf32>
    %14 = arith.select %9, %13, %7 : vector<2x32xi1>, vector<2x32xf32>
    %c0_6 = arith.constant 0 : index
    %c0_7 = arith.constant 0 : index
    %15 = vector.load %arg6[%c0_6, %c0_7] : memref<2x32xf32, #tpu.memory_space<vmem>>, vector<2x32xf32>
    tpu.vector_store %arg6[%c0_6, %c0_7], %14 {strides = array<i32>} : memref<2x32xf32, #tpu.memory_space<vmem>>, vector<2x32xf32>,
    return
  }
  func.func @transform_0(%arg0: i32, %arg1: i32) -> i32 {
    %c0_i32 = arith.constant 0 : i32
    %c0_i32_0 = arith.constant 0 : i32
    return %c0_i32 : i32
  }
  func.func @transform_1(%arg0: i32, %arg1: i32) -> (i32, i32) {
    %c0_i32 = arith.constant 0 : i32
    return %arg0, %arg1 : i32, i32
  }
  func.func @transform_2(%arg0: i32, %arg1: i32) -> (i32, i32) {
    %c0_i32 = arith.constant 0 : i32
    return %arg0, %arg1 : i32, i32
  }
  func.func @transform_3(%arg0: i32, %arg1: i32) -> (i32, i32) {
    %c0_i32 = arith.constant 0 : i32
    return %arg0, %arg1 : i32, i32
  }
  func.func @transform_4(%arg0: i32, %arg1: i32) -> (i32, i32) {
    %c0_i32 = arith.constant 0 : i32
    return %arg0, %arg1 : i32, i32
  }
}

</mosaic_0001>

<llo_original>
// kernel: tpu_custom_call.1
$region0: #{tpu_custom_call.1}
  #allocation0 [shape = 'u32[]', space=smem, size = 0x4, offset = 0x4, fixed_abs, tag = 'smem constant byte address 0x4 - core index']
  #allocation1 [shape = 'u32[144,128]{1,0:T(1,128)}', space=vmem, size = 0x12000, scoped, tag = 'internal scratch']
  %s0 = inlined_call_operand.vmem [shape: f32[3], index: 0, kind: input, shape index: {}]
  %s1 = inlined_call_operand.vmem [shape: f32[2,32], index: 1, kind: input, shape index: {}]
  %s2 = inlined_call_operand.hbm [shape: f32[2,32], index: 2, kind: input, shape index: {}, may-alias: {2,4}]
  %s3 = inlined_call_operand.hbm [shape: f32[2,32], index: 3, kind: output, shape index: {0}]
  %s4 = inlined_call_operand.hbm [shape: f32[2,32], index: 4, kind: output, shape index: {1}, may-alias: {2,4}]
  %5 = xla_tuple %s3, %s4
  %s6 = sld [smem:[#allocation0]]
  $region38: #{tpu_custom_call.1} parent=0
    _
  %s8 = ssub.s32 1, %s6
  %s9 = scalar_select 0, %s8, %s6
  $region1: #{tpu_custom_call.1} parent=0
    #allocation2 [shape = 'u8[512]{0}', space=smem, size = 0x200, scoped, tag = 'input window, operand 0, single buffered']
    #allocation3 [shape = 's32[1]{0}', space=sflag, size = 0x4, scoped, tag = 'scoped memory for tpu_custom_call.1']
    #allocation4 [shape = 's32[1]{0}', space=sflag, size = 0x4, scoped, tag = 'scoped memory for tpu_custom_call.1']
    #allocation5 [shape = 's32[1]{0}', space=sflag, size = 0x4, scoped, tag = 'scoped memory for tpu_custom_call.1']
    #allocation6 [shape = 'u8[1024]{0}', space=vmem, size = 0x400, scoped, tag = 'input window, operand 2, single buffered']
    #allocation7 [shape = 'u8[1024]{0}', space=vmem, size = 0x400, scoped, tag = 'output window, operand 0, single buffered']
    #allocation8 [shape = 'u8[1024]{0}', space=vmem, size = 0x400, scoped, tag = 'output window, operand 1, single buffered']
    #allocation9 [shape = 's32[1]{0}', space=sflag, size = 0x4, scoped, tag = 'scoped memory for tpu_custom_call.1']
    %10 = vsyncpa [#allocation5], 0
    %11 = vsyncpa [#allocation3], 0
    %12 = vsyncpa [#allocation4], 0
    %13 = vsyncpa [#allocation9], 0
    // Predicated region
    $region2: #{tpu_custom_call.1} parent=1 // pred_check
      _
    $region3: #{tpu_custom_call.1} parent=1 // pred_check_branch
      %15 = sbr.rel (0) target = $region5
    $region4: #{tpu_custom_call.1} parent=1 // pred_region
      %s17 = ssub.s32 16, 16
      %18 = vsyncadd [#allocation5], %s17
      %s20 = sshll.u32 %s0, 4
      %s21 = int_to_ptr.vmem [resolvable:$true] %s20
      %23 = dma.vmem_to_smem %s21, 16, [#allocation2], [#allocation5]
    $region5: #{tpu_custom_call.1} parent=1 // pred_fallthru
      _
    // Predicated region
    $region6: #{tpu_custom_call.1} parent=1 // pred_check
      _
    $region7: #{tpu_custom_call.1} parent=1 // pred_check_branch
      %25 = sbr.rel (0) target = $region9
    $region8: #{tpu_custom_call.1} parent=1 // pred_region
      _
    $region9: #{tpu_custom_call.1} parent=1 // pred_fallthru
      _
    // Predicated region
    $region10: #{tpu_custom_call.1} parent=1 // pred_check
      _
    $region11: #{tpu_custom_call.1} parent=1 // pred_check_branch
      %27 = sbr.rel (0) target = $region13
    $region12: #{tpu_custom_call.1} parent=1 // pred_region
      %s29 = ssub.s32 32, 32
      %30 = vsyncadd [#allocation3], %s29
      %s32 = sshll.u32 [#allocation6], 4
      %s33 = int_to_ptr.vmem [resolvable:$true] %s32
      %35 = dma.hbm_to_vmem [thread:$0]  %s2, 32, %s33, [#allocation3]
    $region13: #{tpu_custom_call.1} parent=1 // pred_fallthru
      _
    // Predicated region
    $region14: #{tpu_custom_call.1} parent=1 // pred_check
      _
    $region15: #{tpu_custom_call.1} parent=1 // pred_check_branch
      %37 = sbr.rel (0) target = $region17
    $region16: #{tpu_custom_call.1} parent=1 // pred_region
      %38 = dma.done [#allocation5], 16
    $region17: #{tpu_custom_call.1} parent=1 // pred_fallthru
      _
    // Predicated region
    $region18: #{tpu_custom_call.1} parent=1 // pred_check
      _
    $region19: #{tpu_custom_call.1} parent=1 // pred_check_branch
      %40 = sbr.rel (0) target = $region21
    $region20: #{tpu_custom_call.1} parent=1 // pred_region
      %41 = dma.done [#allocation3], 32
    $region21: #{tpu_custom_call.1} parent=1 // pred_fallthru
      _
    %42 = sfence
    %s43 = sld [smem:[#allocation2]]
    %s44 = sld [smem:[#allocation2 + $0x1]]
    %s45 = sld [smem:[#allocation2 + $0x2]]
    %v46 = vld [vmem:[#allocation6] sm:$0x3]
    %v47 = vstv %s44
    %v48 = vmul.f32 %v46, %v47
    %v49 = vld [vmem:[%s1] sm:$0x3]
    %v50 = vadd.f32 %v48, %v49
    %v51 = vstv %s43
    %vm52 = vcmp.gt.f32.partialorder %v50, %v51
    %v53 = vsel %vm52, 1, 0
    %v54 = vcvt.s32.f32 %v53
    %vm55 = vcmask 254976
    %56 = vst.msk [vmem:[#allocation7] sm:$0x3] %vm55, %v54
    %v57 = vstv %s45
    %v58 = vsel %vm52, %v57, %v50
    %59 = vst.msk [vmem:[#allocation8] sm:$0x3] %vm55, %v58
    // Predicated region
    $region22: #{tpu_custom_call.1} parent=1 // pred_check
      _
    $region23: #{tpu_custom_call.1} parent=1 // pred_check_branch
      %61 = sbr.rel (0) target = $region25
    $region24: #{tpu_custom_call.1} parent=1 // pred_region
      %s63 = ssub.s32 32, 32
      %64 = vsyncadd [#allocation4], %s63
      %s66 = sshll.u32 [#allocation7], 4
      %s67 = int_to_ptr.vmem [resolvable:$true] %s66
      %69 = dma.vmem_to_hbm [thread:$0]  %s67, 32, %s3, [#allocation4]
    $region25: #{tpu_custom_call.1} parent=1 // pred_fallthru
      _
    // Predicated region
    $region26: #{tpu_custom_call.1} parent=1 // pred_check
      _
    $region27: #{tpu_custom_call.1} parent=1 // pred_check_branch
      %71 = sbr.rel (0) target = $region29
    $region28: #{tpu_custom_call.1} parent=1 // pred_region
      %s73 = ssub.s32 32, 32
      %74 = vsyncadd [#allocation9], %s73
      %s76 = sshll.u32 [#allocation8], 4
      %s77 = int_to_ptr.vmem [resolvable:$true] %s76
      %79 = dma.vmem_to_hbm [thread:$0]  %s77, 32, %s4, [#allocation9]
    $region29: #{tpu_custom_call.1} parent=1 // pred_fallthru
      _
    // Predicated region
    $region30: #{tpu_custom_call.1} parent=1 // pred_check
      _
    $region31: #{tpu_custom_call.1} parent=1 // pred_check_branch
      %81 = sbr.rel (0) target = $region33
    $region32: #{tpu_custom_call.1} parent=1 // pred_region
      %82 = dma.done [#allocation4], 32
    $region33: #{tpu_custom_call.1} parent=1 // pred_fallthru
      _
    // Predicated region
    $region34: #{tpu_custom_call.1} parent=1 // pred_check
      _
    $region35: #{tpu_custom_call.1} parent=1 // pred_check_branch
      %84 = sbr.rel (0) target = $region37
    $region36: #{tpu_custom_call.1} parent=1 // pred_region
      %85 = dma.done [#allocation9], 32
    $region37: #{tpu_custom_call.1} parent=1 // pred_fallthru
      _
    %86 = vsyncpa [#allocation3], 1
    %87 = vsyncpa [#allocation4], 1
    %88 = vsyncpa [#allocation9], 1
    %89 = vsyncpa [#allocation5], 1

</llo_original>
